<compile_context>
chip_gen: v5e
topology: v5e:2x2
jax: 0.10.0
libtpu: 0.0.40
codegen_flags: <defaults>
</compile_context>

<pallas_src>
import functools

import jax
import jax.numpy as jnp
from jax import lax
from jax.experimental import pallas as pl
from jax.experimental.pallas import tpu as pltpu

SIM_COEFF = 25.0
STD_COEFF = 25.0
COV_COEFF = 1.0
BN_EPS = 1e-5        # PyTorch BatchNorm1d default eps
VAR_EPS = 1e-4       # the 0.0001 inside sqrt(var + 0.0001)


# ----------------------------- Pallas kernel --------------------------------
def vicreg_kernel(x3_ref, y3_ref,
                  w1_ref, b1_ref, g1_ref, be1_ref,
                  w2_ref, b2_ref, g2_ref, be2_ref,
                  w3_ref, out_ref, gap_ref, *, batch_size, inv_hw):
    s = pl.program_id(0)
    n_steps = pl.num_programs(0)
    B = x3_ref.shape[0]

    # ---- init GAP accumulator on first step --------------------------------
    @pl.when(s == 0)
    def _init():
        gap_ref[...] = jnp.zeros_like(gap_ref)

    # ---- streamed global-average-pool accumulation (cast to f32 in-kernel) --
    gap_ref[0] = gap_ref[0] + jnp.sum(x3_ref[...].astype(jnp.float32), axis=-1)
    gap_ref[1] = gap_ref[1] + jnp.sum(y3_ref[...].astype(jnp.float32), axis=-1)

    # ---- projector + losses on the last step --------------------------------
    @pl.when(s == n_steps - 1)
    def _finalize():
        C = gap_ref.shape[2]
        inv_b = 1.0 / B
        inv_bm1 = 1.0 / (B - 1)
        inv_bs1 = 1.0 / (batch_size - 1)   # faithful to the PyTorch constructor arg

        # (2, B, C) sums -> (2B, C) means; the two views share each Linear
        f = gap_ref[...].reshape(2 * B, C) * inv_hw

        w1, b1, g1, be1 = w1_ref[...], b1_ref[...], g1_ref[...], be1_ref[...]
        w2, b2, g2, be2 = w2_ref[...], b2_ref[...], g2_ref[...], be2_ref[...]
        w3 = w3_ref[...]

        def bn_relu(h2d, g, be):
            """Per-view BatchNorm1d (train mode, biased var, two-pass) + ReLU,
            done with one (2, B, HID) reshape instead of slice+concat."""
            hid = h2d.shape[1]
            h3 = h2d.reshape(2, B, hid)
            mu = jnp.sum(h3, axis=1, keepdims=True) * inv_b        # (2, 1, hid)
            d = h3 - mu
            var = jnp.sum(d * d, axis=1, keepdims=True) * inv_b
            h3 = d * lax.rsqrt(var + BN_EPS) * g + be
            return jnp.maximum(h3, 0.0).reshape(2 * B, hid)

        # layer 1: Linear + per-view BN(train) + ReLU
        h = jnp.dot(f, w1, preferred_element_type=jnp.float32) + b1
        h = bn_relu(h, g1, be1)
        # layer 2: Linear + per-view BN(train) + ReLU
        h = jnp.dot(h, w2, preferred_element_type=jnp.float32) + b2
        h = bn_relu(h, g2, be2)
        # layer 3: Linear, no bias
        z = jnp.dot(h, w3, preferred_element_type=jnp.float32)     # (2B, NF)

        x = z[:B]
        y = z[B:]
        nf = x.shape[1]

        # --- representation (invariance) loss: mse_loss(x, y) ---
        diff = x - y
        repr_loss = jnp.sum(diff * diff) * (inv_b / nf)

        # --- center ---
        xc = x - jnp.sum(x, axis=0, keepdims=True) * inv_b
        yc = y - jnp.sum(y, axis=0, keepdims=True) * inv_b

        # per-feature sums of squares: reused by std hinge AND cov diagonal
        colsq_x = jnp.sum(xc * xc, axis=0, keepdims=True)           # (1, NF)
        colsq_y = jnp.sum(yc * yc, axis=0, keepdims=True)

        # --- variance (std hinge) loss: torch.var is unbiased (N-1) ---
        std_x = jnp.sqrt(colsq_x * inv_bm1 + VAR_EPS)
        std_y = jnp.sqrt(colsq_y * inv_bm1 + VAR_EPS)
        std_loss = (jnp.mean(jnp.maximum(1.0 - std_x, 0.0))
                    + jnp.mean(jnp.maximum(1.0 - std_y, 0.0))) / 2.0

        # --- covariance loss ---
        # off-diag sum(cov^2) = (||Xc^T Xc||_F^2 - sum(diag^2)) / (bs-1)^2,
        # and ||Xc^T Xc||_F^2 == ||Xc Xc^T||_F^2, so use the B x B Gram when
        # NF >= B (no NF x NF matrix ever materialized).
        if nf >= B:
            dn = (((1,), (1,)), ((), ()))                           # Xc @ Xc^T
            gx = lax.dot_general(xc, xc, dimension_numbers=dn,
                                 preferred_element_type=jnp.float32)
            gy = lax.dot_general(yc, yc, dimension_numbers=dn,
                                 preferred_element_type=jnp.float32)
            fro_x = jnp.sum(gx * gx)
            fro_y = jnp.sum(gy * gy)
        else:
            dn = (((0,), (0,)), ((), ()))                           # Xc^T @ Xc
            cx = lax.dot_general(xc, xc, dimension_numbers=dn,
                                 preferred_element_type=jnp.float32)
            cy = lax.dot_general(yc, yc, dimension_numbers=dn,
                                 preferred_element_type=jnp.float32)
            fro_x = jnp.sum(cx * cx)
            fro_y = jnp.sum(cy * cy)

        diagsq_x = jnp.sum(colsq_x * colsq_x)
        diagsq_y = jnp.sum(colsq_y * colsq_y)
        cov_loss = (((fro_x - diagsq_x) + (fro_y - diagsq_y))
                    * (inv_bs1 * inv_bs1) / nf)

        out_ref[0, 0] = (SIM_COEFF * repr_loss
                         + STD_COEFF * std_loss
                         + COV_COEFF * cov_loss)


# ------------------------------- wrapper -------------------------------------
def _pick_spatial_chunk(hw, max_chunk=2048):
    """Spatial chunk size: full extent when small, otherwise a lane-aligned
    (multiple-of-128) divisor of hw so the BlockSpec tiling constraint holds."""
    if hw <= max_chunk:
        return hw
    for t in range(max_chunk, 0, -1):
        if hw % t == 0 and t % 128 == 0:
            return t
    return hw   # no aligned divisor: fall back to a single untiled block


def vicreg_loss(x_img, y_img, params, *, batch_size):
    B, C, H, W = x_img.shape
    HW = H * W
    # metadata-only reshape; NO wrapper-side dtype cast (cast happens in-kernel)
    x3 = x_img.reshape(B, C, HW)
    y3 = y_img.reshape(B, C, HW)

    (w1, b1, g1, be1, w2, b2, g2, be2, w3) = params
    hid = w1.shape[1]
    nf = w3.shape[1]

    t_hw = _pick_spatial_chunk(HW)
    n_chunks = HW // t_hw

    # --- advisory cost estimate -------------------------------------------
    in_itemsize = x3.dtype.itemsize
    param_bytes = sum(int(p.size) * p.dtype.itemsize for p in params)
    gap_flops = 2 * B * C * HW
    matmul_flops = 2 * (2 * B) * (C * hid + hid * hid + hid * nf)
    cov_flops = (2 * 2 * B * B * nf) if nf >= B else (2 * 2 * B * nf * nf)
    flops = gap_flops + matmul_flops + cov_flops
    bytes_accessed = 2 * B * C * HW * in_itemsize + param_bytes + 4
    transcendentals = 4 * hid + 2 * nf

    # --- VMEM limit: actual resident footprint, capped per-generation -------
    tile_bytes = 2 * 2 * B * C * t_hw * in_itemsize      # 2 inputs x double buffer
    act_bytes = 4 * (2 * B) * (C + 3 * hid + 2 * nf)     # stacked activations (f32)
    cov_bytes = 4 * 2 * (B * B if nf >= B else nf * nf)  # two Gram / cov matrices
    scratch_bytes = 4 * 2 * B * C
    footprint = param_bytes + tile_bytes + act_bytes + cov_bytes + scratch_bytes
    try:
        vmem_cap = int(pltpu.get_tpu_info().vmem_capacity_bytes)
    except Exception:  # pragma: no cover - conservative fallback
        vmem_cap = 64 * 1024 * 1024
    vmem_limit = int(min(max(4 * 1024 * 1024, 2 * footprint),
                         (3 * vmem_cap) // 4))

    kernel = functools.partial(vicreg_kernel,
                               batch_size=batch_size,
                               inv_hw=1.0 / HW)

    grid_spec = pltpu.PrefetchScalarGridSpec(
        num_scalar_prefetch=0,
        grid=(n_chunks,),
        in_specs=[
            pl.BlockSpec((B, C, t_hw), lambda s: (0, 0, s)),
            pl.BlockSpec((B, C, t_hw), lambda s: (0, 0, s)),
            pl.BlockSpec((C, hid), lambda s: (0, 0)),
            pl.BlockSpec((1, hid), lambda s: (0, 0)),
            pl.BlockSpec((1, hid), lambda s: (0, 0)),
            pl.BlockSpec((1, hid), lambda s: (0, 0)),
            pl.BlockSpec((hid, hid), lambda s: (0, 0)),
            pl.BlockSpec((1, hid), lambda s: (0, 0)),
            pl.BlockSpec((1, hid), lambda s: (0, 0)),
            pl.BlockSpec((1, hid), lambda s: (0, 0)),
            pl.BlockSpec((hid, nf), lambda s: (0, 0)),
        ],
        out_specs=pl.BlockSpec((1, 1), lambda s: (0, 0),
                               memory_space=pltpu.MemorySpace.SMEM),
        scratch_shapes=[pltpu.VMEM((2, B, C), jnp.float32)],
    )

    out = pl.pallas_call(
        kernel,
        out_shape=jax.ShapeDtypeStruct((1, 1), jnp.float32),
        grid_spec=grid_spec,
        cost_estimate=pl.CostEstimate(flops=flops,
                                      bytes_accessed=bytes_accessed,
                                      transcendentals=transcendentals),
        compiler_params=pltpu.CompilerParams(
            dimension_semantics=("arbitrary",),   # GAP accumulation axis
            vmem_limit_bytes=vmem_limit),
    )(x3, y3, *params)
    return out[0, 0]


# ------------------------- pure-JAX reference --------------------------------
def vicreg_loss_ref(x_img, y_img, params, *, batch_size):
    (w1, b1, g1, be1, w2, b2, g2, be2, w3) = params
    xf = jnp.mean(x_img.astype(jnp.float32), axis=(2, 3))
    yf = jnp.mean(y_img.astype(jnp.float32), axis=(2, 3))

    def proj(f):
        h = f @ w1 + b1
        h = (h - h.mean(0, keepdims=True)) / jnp.sqrt(h.var(0, keepdims=True) + BN_EPS) * g1 + be1
        h = jnp.maximum(h, 0.0)
        h = h @ w2 + b2
        h = (h - h.mean(0, keepdims=True)) / jnp.sqrt(h.var(0, keepdims=True) + BN_EPS) * g2 + be2
        h = jnp.maximum(h, 0.0)
        return h @ w3

    x, y = proj(xf), proj(yf)
    repr_loss = jnp.mean((x - y) ** 2)
    xc = x - x.mean(0)
    yc = y - y.mean(0)
    std_x = jnp.sqrt(xc.var(0, ddof=1) + VAR_EPS)
    std_y = jnp.sqrt(yc.var(0, ddof=1) + VAR_EPS)
    std_loss = jnp.mean(jnp.maximum(1 - std_x, 0)) / 2 + jnp.mean(jnp.maximum(1 - std_y, 0)) / 2
    nf = x.shape[1]
    cov_x = xc.T @ xc / (batch_size - 1)
    cov_y = yc.T @ yc / (batch_size - 1)
    mask = 1.0 - jnp.eye(nf)
    cov_loss = jnp.sum((cov_x * mask) ** 2) / nf + jnp.sum((cov_y * mask) ** 2) / nf
    return SIM_COEFF * repr_loss + STD_COEFF * std_loss + COV_COEFF * cov_loss


# --------------------------------- main ---------------------------------------
if __name__ == "__main__":
    key = jax.random.PRNGKey(0)
    B, C, H, W = 8, 16, 8, 8          # NCHW input, model_output_dim = C = 16
    HID = 32                           # projector '32-32-32' -> num_features = 32
    batch_size = B                     # constructor arg used by the cov term

    keys = jax.random.split(key, 8)
    x_img = jax.random.normal(keys[0], (B, C, H, W), dtype=jnp.float32)
    y_img = x_img + 0.1 * jax.random.normal(keys[1], (B, C, H, W), dtype=jnp.float32)

    # deterministic projector parameters (Linear, BatchNorm1d affine, Linear, ...)
    w1 = 0.2 * jax.random.normal(keys[2], (C, HID), dtype=jnp.float32)
    b1 = 0.1 * jax.random.normal(keys[3], (1, HID), dtype=jnp.float32)
    g1 = jnp.ones((1, HID), jnp.float32)
    be1 = jnp.zeros((1, HID), jnp.float32)
    w2 = 0.2 * jax.random.normal(keys[4], (HID, HID), dtype=jnp.float32)
    b2 = 0.1 * jax.random.normal(keys[5], (1, HID), dtype=jnp.float32)
    g2 = jnp.ones((1, HID), jnp.float32)
    be2 = jnp.zeros((1, HID), jnp.float32)
    w3 = 0.2 * jax.random.normal(keys[6], (HID, HID), dtype=jnp.float32)  # no bias
    params = (w1, b1, g1, be1, w2, b2, g2, be2, w3)

    loss = jax.block_until_ready(vicreg_loss(x_img, y_img, params, batch_size=batch_size))
    loss_ref = jax.block_until_ready(vicreg_loss_ref(x_img, y_img, params, batch_size=batch_size))

    assert jnp.isfinite(loss), "non-finite loss"
    assert jnp.allclose(loss, loss_ref, rtol=1e-3, atol=1e-3), (loss, loss_ref)
    print("KERNEL_OK")
</pallas_src>

<mosaic_0001>
module attributes {stable_mosaic.version = 11 : i64} {
  func.func @vicreg_kernel(%arg0: i32, %arg1: memref<8x16x64xf32, #tpu.memory_space<vmem>>, %arg2: memref<8x16x64xf32, #tpu.memory_space<vmem>>, %arg3: memref<16x32xf32, #tpu.memory_space<vmem>>, %arg4: memref<1x32xf32, #tpu.memory_space<vmem>>, %arg5: memref<1x32xf32, #tpu.memory_space<vmem>>, %arg6: memref<1x32xf32, #tpu.memory_space<vmem>>, %arg7: memref<32x32xf32, #tpu.memory_space<vmem>>, %arg8: memref<1x32xf32, #tpu.memory_space<vmem>>, %arg9: memref<1x32xf32, #tpu.memory_space<vmem>>, %arg10: memref<1x32xf32, #tpu.memory_space<vmem>>, %arg11: memref<32x32xf32, #tpu.memory_space<vmem>>, %arg12: memref<1x1xf32, #tpu.memory_space<smem>>, %arg13: memref<2x8x16xf32, #tpu.memory_space<vmem>>) attributes {dimension_semantics = [#tpu.dimension_semantics<arbitrary>], iteration_bounds = array<i64: 1>, scalar_prefetch = 0 : i64, scratch_operands = 1 : i64, tpu.core_type = #tpu.core_type<tc>, window_params = [{transform_indices = @transform_0, window_bounds = array<i64: 8, 16, 64>}, {transform_indices = @transform_1, window_bounds = array<i64: 8, 16, 64>}, {pipeline_mode = #tpu.pipeline_mode<synchronous>, transform_indices = @transform_2, window_bounds = array<i64: 16, 32>}, {pipeline_mode = #tpu.pipeline_mode<synchronous>, transform_indices = @transform_3, window_bounds = array<i64: 1, 32>}, {pipeline_mode = #tpu.pipeline_mode<synchronous>, transform_indices = @transform_4, window_bounds = array<i64: 1, 32>}, {pipeline_mode = #tpu.pipeline_mode<synchronous>, transform_indices = @transform_5, window_bounds = array<i64: 1, 32>}, {pipeline_mode = #tpu.pipeline_mode<synchronous>, transform_indices = @transform_6, window_bounds = array<i64: 32, 32>}, {pipeline_mode = #tpu.pipeline_mode<synchronous>, transform_indices = @transform_7, window_bounds = array<i64: 1, 32>}, {pipeline_mode = #tpu.pipeline_mode<synchronous>, transform_indices = @transform_8, window_bounds = array<i64: 1, 32>}, {pipeline_mode = #tpu.pipeline_mode<synchronous>, transform_indices = @transform_9, window_bounds = array<i64: 1, 32>}, {pipeline_mode = #tpu.pipeline_mode<synchronous>, transform_indices = @transform_10, window_bounds = array<i64: 32, 32>}, {transform_indices = @transform_11, window_bounds = array<i64: 1, 1>}]} {
    %c0_i32 = arith.constant 0 : i32
    %0 = arith.cmpi eq, %arg0, %c0_i32 : i32
    %1 = arith.extui %0 : i1 to i32
    %c0_i32_0 = arith.constant 0 : i32
    %2 = arith.cmpi ne, %1, %c0_i32_0 : i32
    scf.if %2 {
      %cst_20 = arith.constant 0.000000e+00 : f32
      %22 = vector.broadcast %cst_20 : f32 to vector<2x8x16xf32>
      %c0_21 = arith.constant 0 : index
      %c0_22 = arith.constant 0 : index
      %c0_23 = arith.constant 0 : index
      %23 = vector.load %arg13[%c0_21, %c0_22, %c0_23] : memref<2x8x16xf32, #tpu.memory_space<vmem>>, vector<2x8x16xf32>
      tpu.vector_store %arg13[%c0_21, %c0_22, %c0_23], %22 {strides = array<i32>} : memref<2x8x16xf32, #tpu.memory_space<vmem>>, vector<2x8x16xf32>,
    } else {
    }
    %c0 = arith.constant 0 : index
    %c0_1 = arith.constant 0 : index
    %c0_2 = arith.constant 0 : index
    %3 = vector.load %arg13[%c0, %c0_1, %c0_2] : memref<2x8x16xf32, #tpu.memory_space<vmem>>, vector<1x8x16xf32>
    %4 = vector.shape_cast %3 : vector<1x8x16xf32> to vector<8x16xf32>
    %c0_3 = arith.constant 0 : index
    %c0_4 = arith.constant 0 : index
    %c0_5 = arith.constant 0 : index
    %5 = vector.load %arg1[%c0_3, %c0_4, %c0_5] : memref<8x16x64xf32, #tpu.memory_space<vmem>>, vector<8x16x64xf32>
    %cst = arith.constant dense<0.000000e+00> : vector<8x16xf32>
    %6 = vector.multi_reduction <add>, %5, %cst [2] : vector<8x16x64xf32> to vector<8x16xf32>
    %7 = arith.addf %4, %6 : vector<8x16xf32>
    %c0_6 = arith.constant 0 : index
    %c0_7 = arith.constant 0 : index
    %c0_8 = arith.constant 0 : index
    %8 = vector.load %arg13[%c0_6, %c0_7, %c0_8] : memref<2x8x16xf32, #tpu.memory_space<vmem>>, vector<1x8x16xf32>
    %9 = vector.shape_cast %8 : vector<1x8x16xf32> to vector<8x16xf32>
    %10 = vector.shape_cast %7 : vector<8x16xf32> to vector<1x8x16xf32>
    tpu.vector_store %arg13[%c0_6, %c0_7, %c0_8], %10 {strides = array<i32>} : memref<2x8x16xf32, #tpu.memory_space<vmem>>, vector<1x8x16xf32>,
    %c1 = arith.constant 1 : index
    %c0_9 = arith.constant 0 : index
    %c0_10 = arith.constant 0 : index
    %11 = vector.load %arg13[%c1, %c0_9, %c0_10] : memref<2x8x16xf32, #tpu.memory_space<vmem>>, vector<1x8x16xf32>
    %12 = vector.shape_cast %11 : vector<1x8x16xf32> to vector<8x16xf32>
    %c0_11 = arith.constant 0 : index
    %c0_12 = arith.constant 0 : index
    %c0_13 = arith.constant 0 : index
    %13 = vector.load %arg2[%c0_11, %c0_12, %c0_13] : memref<8x16x64xf32, #tpu.memory_space<vmem>>, vector<8x16x64xf32>
    %cst_14 = arith.constant dense<0.000000e+00> : vector<8x16xf32>
    %14 = vector.multi_reduction <add>, %13, %cst_14 [2] : vector<8x16x64xf32> to vector<8x16xf32>
    %15 = arith.addf %12, %14 : vector<8x16xf32>
    %c1_15 = arith.constant 1 : index
    %c0_16 = arith.constant 0 : index
    %c0_17 = arith.constant 0 : index
    %16 = vector.load %arg13[%c1_15, %c0_16, %c0_17] : memref<2x8x16xf32, #tpu.memory_space<vmem>>, vector<1x8x16xf32>
    %17 = vector.shape_cast %16 : vector<1x8x16xf32> to vector<8x16xf32>
    %18 = vector.shape_cast %15 : vector<8x16xf32> to vector<1x8x16xf32>
    tpu.vector_store %arg13[%c1_15, %c0_16, %c0_17], %18 {strides = array<i32>} : memref<2x8x16xf32, #tpu.memory_space<vmem>>, vector<1x8x16xf32>,
    %c0_i32_18 = arith.constant 0 : i32
    %19 = arith.cmpi eq, %arg0, %c0_i32_18 : i32
    %20 = arith.extui %19 : i1 to i32
    %c0_i32_19 = arith.constant 0 : i32
    %21 = arith.cmpi ne, %20, %c0_i32_19 : i32
    scf.if %21 {
      %c0_20 = arith.constant 0 : index
      %c0_21 = arith.constant 0 : index
      %c0_22 = arith.constant 0 : index
      %22 = vector.load %arg13[%c0_20, %c0_21, %c0_22] : memref<2x8x16xf32, #tpu.memory_space<vmem>>, vector<2x8x16xf32>
      %23 = vector.shape_cast %22 : vector<2x8x16xf32> to vector<16x16xf32>
      %cst_23 = arith.constant 1.562500e-02 : f32
      %24 = vector.broadcast %cst_23 : f32 to vector<16x16xf32>
      %25 = arith.mulf %23, %24 : vector<16x16xf32>
      %c0_24 = arith.constant 0 : index
      %c0_25 = arith.constant 0 : index
      %26 = vector.load %arg3[%c0_24, %c0_25] : memref<16x32xf32, #tpu.memory_space<vmem>>, vector<16x32xf32>
      %c0_26 = arith.constant 0 : index
      %c0_27 = arith.constant 0 : index
      %27 = vector.load %arg4[%c0_26, %c0_27] : memref<1x32xf32, #tpu.memory_space<vmem>>, vector<1x32xf32>
      %c0_28 = arith.constant 0 : index
      %c0_29 = arith.constant 0 : index
      %28 = vector.load %arg5[%c0_28, %c0_29] : memref<1x32xf32, #tpu.memory_space<vmem>>, vector<1x32xf32>
      %c0_30 = arith.constant 0 : index
      %c0_31 = arith.constant 0 : index
      %29 = vector.load %arg6[%c0_30, %c0_31] : memref<1x32xf32, #tpu.memory_space<vmem>>, vector<1x32xf32>
      %c0_32 = arith.constant 0 : index
      %c0_33 = arith.constant 0 : index
      %30 = vector.load %arg7[%c0_32, %c0_33] : memref<32x32xf32, #tpu.memory_space<vmem>>, vector<32x32xf32>
      %c0_34 = arith.constant 0 : index
      %c0_35 = arith.constant 0 : index
      %31 = vector.load %arg8[%c0_34, %c0_35] : memref<1x32xf32, #tpu.memory_space<vmem>>, vector<1x32xf32>
      %c0_36 = arith.constant 0 : index
      %c0_37 = arith.constant 0 : index
      %32 = vector.load %arg9[%c0_36, %c0_37] : memref<1x32xf32, #tpu.memory_space<vmem>>, vector<1x32xf32>
      %c0_38 = arith.constant 0 : index
      %c0_39 = arith.constant 0 : index
      %33 = vector.load %arg10[%c0_38, %c0_39] : memref<1x32xf32, #tpu.memory_space<vmem>>, vector<1x32xf32>
      %c0_40 = arith.constant 0 : index
      %c0_41 = arith.constant 0 : index
      %34 = vector.load %arg11[%c0_40, %c0_41] : memref<32x32xf32, #tpu.memory_space<vmem>>, vector<32x32xf32>
      %cst_42 = arith.constant dense<0.000000e+00> : vector<16x32xf32>
      %35 = tpu.matmul %25, %26, %cst_42 {dimension_numbers = #tpu.dot_dimension_numbers<[1], [0], [0], [1], [0, 0, 1, 1], [], []>} : vector<16x16xf32>, vector<16x32xf32>, vector<16x32xf32> -> vector<16x32xf32>
      %36 = vector.broadcast %27 : vector<1x32xf32> to vector<16x32xf32>
      %37 = arith.addf %35, %36 : vector<16x32xf32>
      %38 = vector.shape_cast %37 : vector<16x32xf32> to vector<2x8x32xf32>
      %cst_43 = arith.constant dense<0.000000e+00> : vector<2x32xf32>
      %39 = vector.multi_reduction <add>, %38, %cst_43 [1] : vector<2x8x32xf32> to vector<2x32xf32>
      %40 = vector.shape_cast %39 : vector<2x32xf32> to vector<2x1x32xf32>
      %cst_44 = arith.constant 1.250000e-01 : f32
      %41 = vector.broadcast %cst_44 : f32 to vector<2x1x32xf32>
      %42 = arith.mulf %40, %41 : vector<2x1x32xf32>
      %43 = vector.broadcast %42 : vector<2x1x32xf32> to vector<2x8x32xf32>
      %44 = arith.subf %38, %43 : vector<2x8x32xf32>
      %45 = arith.mulf %44, %44 : vector<2x8x32xf32>
      %cst_45 = arith.constant dense<0.000000e+00> : vector<2x32xf32>
      %46 = vector.multi_reduction <add>, %45, %cst_45 [1] : vector<2x8x32xf32> to vector<2x32xf32>
      %47 = vector.shape_cast %46 : vector<2x32xf32> to vector<2x1x32xf32>
      %cst_46 = arith.constant 1.250000e-01 : f32
      %48 = vector.broadcast %cst_46 : f32 to vector<2x1x32xf32>
      %49 = arith.mulf %47, %48 : vector<2x1x32xf32>
      %cst_47 = arith.constant 9.99999974E-6 : f32
      %50 = vector.broadcast %cst_47 : f32 to vector<2x1x32xf32>
      %51 = arith.addf %49, %50 : vector<2x1x32xf32>
      %52 = math.rsqrt %51 : vector<2x1x32xf32>
      %53 = vector.broadcast %52 : vector<2x1x32xf32> to vector<2x8x32xf32>
      %54 = arith.mulf %44, %53 : vector<2x8x32xf32>
      %55 = vector.shape_cast %28 : vector<1x32xf32> to vector<1x1x32xf32>
      %56 = vector.broadcast %55 : vector<1x1x32xf32> to vector<2x8x32xf32>
      %57 = arith.mulf %54, %56 : vector<2x8x32xf32>
      %58 = vector.shape_cast %29 : vector<1x32xf32> to vector<1x1x32xf32>
      %59 = vector.broadcast %58 : vector<1x1x32xf32> to vector<2x8x32xf32>
      %60 = arith.addf %57, %59 : vector<2x8x32xf32>
      %cst_48 = arith.constant 0.000000e+00 : f32
      %61 = vector.broadcast %cst_48 : f32 to vector<2x8x32xf32>
      %62 = arith.maximumf %60, %61 : vector<2x8x32xf32>
      %63 = vector.shape_cast %62 : vector<2x8x32xf32> to vector<16x32xf32>
      %cst_49 = arith.constant dense<0.000000e+00> : vector<16x32xf32>
      %64 = tpu.matmul %63, %30, %cst_49 {dimension_numbers = #tpu.dot_dimension_numbers<[1], [0], [0], [1], [0, 0, 1, 1], [], []>} : vector<16x32xf32>, vector<32x32xf32>, vector<16x32xf32> -> vector<16x32xf32>
      %65 = vector.broadcast %31 : vector<1x32xf32> to vector<16x32xf32>
      %66 = arith.addf %64, %65 : vector<16x32xf32>
      %67 = vector.shape_cast %66 : vector<16x32xf32> to vector<2x8x32xf32>
      %cst_50 = arith.constant dense<0.000000e+00> : vector<2x32xf32>
      %68 = vector.multi_reduction <add>, %67, %cst_50 [1] : vector<2x8x32xf32> to vector<2x32xf32>
      %69 = vector.shape_cast %68 : vector<2x32xf32> to vector<2x1x32xf32>
      %cst_51 = arith.constant 1.250000e-01 : f32
      %70 = vector.broadcast %cst_51 : f32 to vector<2x1x32xf32>
      %71 = arith.mulf %69, %70 : vector<2x1x32xf32>
      %72 = vector.broadcast %71 : vector<2x1x32xf32> to vector<2x8x32xf32>
      %73 = arith.subf %67, %72 : vector<2x8x32xf32>
      %74 = arith.mulf %73, %73 : vector<2x8x32xf32>
      %cst_52 = arith.constant dense<0.000000e+00> : vector<2x32xf32>
      %75 = vector.multi_reduction <add>, %74, %cst_52 [1] : vector<2x8x32xf32> to vector<2x32xf32>
      %76 = vector.shape_cast %75 : vector<2x32xf32> to vector<2x1x32xf32>
      %cst_53 = arith.constant 1.250000e-01 : f32
      %77 = vector.broadcast %cst_53 : f32 to vector<2x1x32xf32>
      %78 = arith.mulf %76, %77 : vector<2x1x32xf32>
      %cst_54 = arith.constant 9.99999974E-6 : f32
      %79 = vector.broadcast %cst_54 : f32 to vector<2x1x32xf32>
      %80 = arith.addf %78, %79 : vector<2x1x32xf32>
      %81 = math.rsqrt %80 : vector<2x1x32xf32>
      %82 = vector.broadcast %81 : vector<2x1x32xf32> to vector<2x8x32xf32>
      %83 = arith.mulf %73, %82 : vector<2x8x32xf32>
      %84 = vector.shape_cast %32 : vector<1x32xf32> to vector<1x1x32xf32>
      %85 = vector.broadcast %84 : vector<1x1x32xf32> to vector<2x8x32xf32>
      %86 = arith.mulf %83, %85 : vector<2x8x32xf32>
      %87 = vector.shape_cast %33 : vector<1x32xf32> to vector<1x1x32xf32>
      %88 = vector.broadcast %87 : vector<1x1x32xf32> to vector<2x8x32xf32>
      %89 = arith.addf %86, %88 : vector<2x8x32xf32>
      %cst_55 = arith.constant 0.000000e+00 : f32
      %90 = vector.broadcast %cst_55 : f32 to vector<2x8x32xf32>
      %91 = arith.maximumf %89, %90 : vector<2x8x32xf32>
      %92 = vector.shape_cast %91 : vector<2x8x32xf32> to vector<16x32xf32>
      %cst_56 = arith.constant dense<0.000000e+00> : vector<16x32xf32>
      %93 = tpu.matmul %92, %34, %cst_56 {dimension_numbers = #tpu.dot_dimension_numbers<[1], [0], [0], [1], [0, 0, 1, 1], [], []>} : vector<16x32xf32>, vector<32x32xf32>, vector<16x32xf32> -> vector<16x32xf32>
      %94 = vector.extract_strided_slice %93 {offsets = [0, 0], sizes = [8, 32], strides = [1, 1]} : vector<16x32xf32> to vector<8x32xf32>
      %95 = vector.extract_strided_slice %93 {offsets = [8, 0], sizes = [8, 32], strides = [1, 1]} : vector<16x32xf32> to vector<8x32xf32>
      %96 = arith.subf %94, %95 : vector<8x32xf32>
      %97 = arith.mulf %96, %96 : vector<8x32xf32>
      %98 = vector.shape_cast %97 : vector<8x32xf32> to vector<1x8x32xf32>
      %cst_57 = arith.constant dense<0.000000e+00> : vector<1xf32>
      %99 = vector.multi_reduction <add>, %98, %cst_57 [1, 2] : vector<1x8x32xf32> to vector<1xf32>
      %100 = vector.shape_cast %99 : vector<1xf32> to vector<1x1x1xf32>
      %101 = vector.extract %100[0, 0, 0] : f32 from vector<1x1x1xf32>
      %cst_58 = arith.constant 3.906250e-03 : f32
      %102 = arith.mulf %101, %cst_58 : f32
      %cst_59 = arith.constant dense<0.000000e+00> : vector<32xf32>
      %103 = vector.multi_reduction <add>, %94, %cst_59 [0] : vector<8x32xf32> to vector<32xf32>
      %104 = vector.shape_cast %103 : vector<32xf32> to vector<1x32xf32>
      %cst_60 = arith.constant 1.250000e-01 : f32
      %105 = vector.broadcast %cst_60 : f32 to vector<1x32xf32>
      %106 = arith.mulf %104, %105 : vector<1x32xf32>
      %107 = vector.broadcast %106 : vector<1x32xf32> to vector<8x32xf32>
      %108 = arith.subf %94, %107 : vector<8x32xf32>
      %cst_61 = arith.constant dense<0.000000e+00> : vector<32xf32>
      %109 = vector.multi_reduction <add>, %95, %cst_61 [0] : vector<8x32xf32> to vector<32xf32>
      %110 = vector.shape_cast %109 : vector<32xf32> to vector<1x32xf32>
      %cst_62 = arith.constant 1.250000e-01 : f32
      %111 = vector.broadcast %cst_62 : f32 to vector<1x32xf32>
      %112 = arith.mulf %110, %111 : vector<1x32xf32>
      %113 = vector.broadcast %112 : vector<1x32xf32> to vector<8x32xf32>
      %114 = arith.subf %95, %113 : vector<8x32xf32>
      %115 = arith.mulf %108, %108 : vector<8x32xf32>
      %cst_63 = arith.constant dense<0.000000e+00> : vector<32xf32>
      %116 = vector.multi_reduction <add>, %115, %cst_63 [0] : vector<8x32xf32> to vector<32xf32>
      %117 = vector.shape_cast %116 : vector<32xf32> to vector<1x32xf32>
      %118 = arith.mulf %114, %114 : vector<8x32xf32>
      %cst_64 = arith.constant dense<0.000000e+00> : vector<32xf32>
      %119 = vector.multi_reduction <add>, %118, %cst_64 [0] : vector<8x32xf32> to vector<32xf32>
      %120 = vector.shape_cast %119 : vector<32xf32> to vector<1x32xf32>
      %cst_65 = arith.constant 0.142857149 : f32
      %121 = vector.broadcast %cst_65 : f32 to vector<1x32xf32>
      %122 = arith.mulf %117, %121 : vector<1x32xf32>
      %cst_66 = arith.constant 9.99999974E-5 : f32
      %123 = vector.broadcast %cst_66 : f32 to vector<1x32xf32>
      %124 = arith.addf %122, %123 : vector<1x32xf32>
      %125 = math.sqrt %124 : vector<1x32xf32>
      %cst_67 = arith.constant 0.142857149 : f32
      %126 = vector.broadcast %cst_67 : f32 to vector<1x32xf32>
      %127 = arith.mulf %120, %126 : vector<1x32xf32>
      %cst_68 = arith.constant 9.99999974E-5 : f32
      %128 = vector.broadcast %cst_68 : f32 to vector<1x32xf32>
      %129 = arith.addf %127, %128 : vector<1x32xf32>
      %130 = math.sqrt %129 : vector<1x32xf32>
      %cst_69 = arith.constant 1.000000e+00 : f32
      %131 = vector.broadcast %cst_69 : f32 to vector<1x32xf32>
      %132 = arith.subf %131, %125 : vector<1x32xf32>
      %cst_70 = arith.constant 0.000000e+00 : f32
      %133 = vector.broadcast %cst_70 : f32 to vector<1x32xf32>
      %134 = arith.maximumf %132, %133 : vector<1x32xf32>
      %135 = vector.shape_cast %134 : vector<1x32xf32> to vector<1x1x32xf32>
      %cst_71 = arith.constant dense<0.000000e+00> : vector<1xf32>
      %136 = vector.multi_reduction <add>, %135, %cst_71 [1, 2] : vector<1x1x32xf32> to vector<1xf32>
      %137 = vector.shape_cast %136 : vector<1xf32> to vector<1x1x1xf32>
      %138 = vector.extract %137[0, 0, 0] : f32 from vector<1x1x1xf32>
      %cst_72 = arith.constant 3.200000e+01 : f32
      %139 = arith.divf %138, %cst_72 : f32
      %cst_73 = arith.constant 1.000000e+00 : f32
      %140 = vector.broadcast %cst_73 : f32 to vector<1x32xf32>
      %141 = arith.subf %140, %130 : vector<1x32xf32>
      %cst_74 = arith.constant 0.000000e+00 : f32
      %142 = vector.broadcast %cst_74 : f32 to vector<1x32xf32>
      %143 = arith.maximumf %141, %142 : vector<1x32xf32>
      %144 = vector.shape_cast %143 : vector<1x32xf32> to vector<1x1x32xf32>
      %cst_75 = arith.constant dense<0.000000e+00> : vector<1xf32>
      %145 = vector.multi_reduction <add>, %144, %cst_75 [1, 2] : vector<1x1x32xf32> to vector<1xf32>
      %146 = vector.shape_cast %145 : vector<1xf32> to vector<1x1x1xf32>
      %147 = vector.extract %146[0, 0, 0] : f32 from vector<1x1x1xf32>
      %cst_76 = arith.constant 3.200000e+01 : f32
      %148 = arith.divf %147, %cst_76 : f32
      %149 = arith.addf %139, %148 : f32
      %cst_77 = arith.constant 2.000000e+00 : f32
      %150 = arith.divf %149, %cst_77 : f32
      %cst_78 = arith.constant dense<0.000000e+00> : vector<8x8xf32>
      %151 = tpu.matmul %108, %108, %cst_78 {dimension_numbers = #tpu.dot_dimension_numbers<[1], [1], [0], [0], [0, 0, 1, 0], [], []>} : vector<8x32xf32>, vector<8x32xf32>, vector<8x8xf32> -> vector<8x8xf32>
      %cst_79 = arith.constant dense<0.000000e+00> : vector<8x8xf32>
      %152 = tpu.matmul %114, %114, %cst_79 {dimension_numbers = #tpu.dot_dimension_numbers<[1], [1], [0], [0], [0, 0, 1, 0], [], []>} : vector<8x32xf32>, vector<8x32xf32>, vector<8x8xf32> -> vector<8x8xf32>
      %153 = arith.mulf %151, %151 : vector<8x8xf32>
      %154 = vector.shape_cast %153 : vector<8x8xf32> to vector<1x8x8xf32>
      %cst_80 = arith.constant dense<0.000000e+00> : vector<1xf32>
      %155 = vector.multi_reduction <add>, %154, %cst_80 [1, 2] : vector<1x8x8xf32> to vector<1xf32>
      %156 = vector.shape_cast %155 : vector<1xf32> to vector<1x1x1xf32>
      %157 = vector.extract %156[0, 0, 0] : f32 from vector<1x1x1xf32>
      %158 = arith.mulf %152, %152 : vector<8x8xf32>
      %159 = vector.shape_cast %158 : vector<8x8xf32> to vector<1x8x8xf32>
      %cst_81 = arith.constant dense<0.000000e+00> : vector<1xf32>
      %160 = vector.multi_reduction <add>, %159, %cst_81 [1, 2] : vector<1x8x8xf32> to vector<1xf32>
      %161 = vector.shape_cast %160 : vector<1xf32> to vector<1x1x1xf32>
      %162 = vector.extract %161[0, 0, 0] : f32 from vector<1x1x1xf32>
      %163 = arith.mulf %117, %117 : vector<1x32xf32>
      %164 = vector.shape_cast %163 : vector<1x32xf32> to vector<1x1x32xf32>
      %cst_82 = arith.constant dense<0.000000e+00> : vector<1xf32>
      %165 = vector.multi_reduction <add>, %164, %cst_82 [1, 2] : vector<1x1x32xf32> to vector<1xf32>
      %166 = vector.shape_cast %165 : vector<1xf32> to vector<1x1x1xf32>
      %167 = vector.extract %166[0, 0, 0] : f32 from vector<1x1x1xf32>
      %168 = arith.mulf %120, %120 : vector<1x32xf32>
      %169 = vector.shape_cast %168 : vector<1x32xf32> to vector<1x1x32xf32>
      %cst_83 = arith.constant dense<0.000000e+00> : vector<1xf32>
      %170 = vector.multi_reduction <add>, %169, %cst_83 [1, 2] : vector<1x1x32xf32> to vector<1xf32>
      %171 = vector.shape_cast %170 : vector<1xf32> to vector<1x1x1xf32>
      %172 = vector.extract %171[0, 0, 0] : f32 from vector<1x1x1xf32>
      %173 = arith.subf %157, %167 : f32
      %174 = arith.subf %162, %172 : f32
      %175 = arith.addf %173, %174 : f32
      %cst_84 = arith.constant 0.0204081628 : f32
      %176 = arith.mulf %175, %cst_84 : f32
      %cst_85 = arith.constant 3.200000e+01 : f32
      %177 = arith.divf %176, %cst_85 : f32
      %cst_86 = arith.constant 2.500000e+01 : f32
      %178 = arith.mulf %cst_86, %102 : f32
      %cst_87 = arith.constant 2.500000e+01 : f32
      %179 = arith.mulf %cst_87, %150 : f32
      %180 = arith.addf %178, %179 : f32
      %cst_88 = arith.constant 1.000000e+00 : f32
      %181 = arith.mulf %cst_88, %177 : f32
      %182 = arith.addf %180, %181 : f32
      %c0_89 = arith.constant 0 : index
      %c0_90 = arith.constant 0 : index
      %183 = memref.load %arg12[%c0_89, %c0_90] : memref<1x1xf32, #tpu.memory_space<smem>>
      memref.store %182, %arg12[%c0_89, %c0_90] : memref<1x1xf32, #tpu.memory_space<smem>>
    } else {
    }
    return
  }
  func.func @transform_0(%arg0: i32) -> (i32, i32, i32) {
    %c0_i32 = arith.constant 0 : i32
    %c0_i32_0 = arith.constant 0 : i32
    %c0_i32_1 = arith.constant 0 : i32
    return %c0_i32, %c0_i32_0, %arg0 : i32, i32, i32
  }
  func.func @transform_1(%arg0: i32) -> (i32, i32, i32) {
    %c0_i32 = arith.constant 0 : i32
    %c0_i32_0 = arith.constant 0 : i32
    %c0_i32_1 = arith.constant 0 : i32
    return %c0_i32, %c0_i32_0, %arg0 : i32, i32, i32
  }
  func.func @transform_2(%arg0: i32) -> (i32, i32) {
    %c0_i32 = arith.constant 0 : i32
    %c0_i32_0 = arith.constant 0 : i32
    %c0_i32_1 = arith.constant 0 : i32
    return %c0_i32, %c0_i32_0 : i32, i32
  }
  func.func @transform_3(%arg0: i32) -> (i32, i32) {
    %c0_i32 = arith.constant 0 : i32
    %c0_i32_0 = arith.constant 0 : i32
    %c0_i32_1 = arith.constant 0 : i32
    return %c0_i32, %c0_i32_0 : i32, i32
  }
  func.func @transform_4(%arg0: i32) -> (i32, i32) {
    %c0_i32 = arith.constant 0 : i32
    %c0_i32_0 = arith.constant 0 : i32
    %c0_i32_1 = arith.constant 0 : i32
    return %c0_i32, %c0_i32_0 : i32, i32
  }
  func.func @transform_5(%arg0: i32) -> (i32, i32) {
    %c0_i32 = arith.constant 0 : i32
    %c0_i32_0 = arith.constant 0 : i32
    %c0_i32_1 = arith.constant 0 : i32
    return %c0_i32, %c0_i32_0 : i32, i32
  }
  func.func @transform_6(%arg0: i32) -> (i32, i32) {
    %c0_i32 = arith.constant 0 : i32
    %c0_i32_0 = arith.constant 0 : i32
    %c0_i32_1 = arith.constant 0 : i32
    return %c0_i32, %c0_i32_0 : i32, i32
  }
  func.func @transform_7(%arg0: i32) -> (i32, i32) {
    %c0_i32 = arith.constant 0 : i32
    %c0_i32_0 = arith.constant 0 : i32
    %c0_i32_1 = arith.constant 0 : i32
    return %c0_i32, %c0_i32_0 : i32, i32
  }
  func.func @transform_8(%arg0: i32) -> (i32, i32) {
    %c0_i32 = arith.constant 0 : i32
    %c0_i32_0 = arith.constant 0 : i32
    %c0_i32_1 = arith.constant 0 : i32
    return %c0_i32, %c0_i32_0 : i32, i32
  }
  func.func @transform_9(%arg0: i32) -> (i32, i32) {
    %c0_i32 = arith.constant 0 : i32
    %c0_i32_0 = arith.constant 0 : i32
    %c0_i32_1 = arith.constant 0 : i32
    return %c0_i32, %c0_i32_0 : i32, i32
  }
  func.func @transform_10(%arg0: i32) -> (i32, i32) {
    %c0_i32 = arith.constant 0 : i32
    %c0_i32_0 = arith.constant 0 : i32
    %c0_i32_1 = arith.constant 0 : i32
    return %c0_i32, %c0_i32_0 : i32, i32
  }
  func.func @transform_11(%arg0: i32) -> (i32, i32) {
    %c0_i32 = arith.constant 0 : i32
    %c0_i32_0 = arith.constant 0 : i32
    %c0_i32_1 = arith.constant 0 : i32
    return %c0_i32, %c0_i32_0 : i32, i32
  }
}

</mosaic_0001>

<llo_original>
// kernel: tpu_custom_call.1
$region0: #{tpu_custom_call.1}
  #allocation0 [shape = 'u32[]', space=smem, size = 0x4, offset = 0x4, fixed_abs, tag = 'smem constant byte address 0x4 - core index']
  #allocation1 [shape = 'u32[72,128]{1,0:T(1,128)}', space=vmem, size = 0x9000, scoped, tag = 'internal scratch']
  #allocation2 [shape = 'f32[2,8,16]{2,1,0:T(8,128)}', space=vmem, size = 0x2000, scoped, tag = 'scratch operand']
  %s0 = inlined_call_operand.hbm [shape: f32[8,16,64], index: 0, kind: input, shape index: {}]
  %s1 = inlined_call_operand.hbm [shape: f32[8,16,64], index: 1, kind: input, shape index: {}]
  %s2 = inlined_call_operand.hbm [shape: f32[16,32], index: 2, kind: input, shape index: {}]
  %s3 = inlined_call_operand.vmem [shape: f32[1,32], index: 3, kind: input, shape index: {}]
  %s4 = inlined_call_operand.vmem [shape: f32[1,32], index: 4, kind: input, shape index: {}]
  %s5 = inlined_call_operand.vmem [shape: f32[1,32], index: 5, kind: input, shape index: {}]
  %s6 = inlined_call_operand.hbm [shape: f32[32,32], index: 6, kind: input, shape index: {}]
  %s7 = inlined_call_operand.vmem [shape: f32[1,32], index: 7, kind: input, shape index: {}]
  %s8 = inlined_call_operand.vmem [shape: f32[1,32], index: 8, kind: input, shape index: {}]
  %s9 = inlined_call_operand.vmem [shape: f32[1,32], index: 9, kind: input, shape index: {}]
  %s10 = inlined_call_operand.hbm [shape: f32[32,32], index: 10, kind: input, shape index: {}]
  %s11 = inlined_call_operand.hbm [shape: f32[1,1], index: 11, kind: output, shape index: {}]
  %s12 = sld [smem:[#allocation0]]
  $region82: #{tpu_custom_call.1} parent=0
    _
  %s14 = ssub.s32 1, %s12
  %s15 = scalar_select 0, %s14, %s12
  $region1: #{tpu_custom_call.1} parent=0
    #allocation3 [shape = 'u8[65536]{0}', space=vmem, size = 0x10000, scoped, tag = 'input window, operand 0, single buffered']
    #allocation4 [shape = 's32[1]{0}', space=sflag, size = 0x4, scoped, tag = 'scoped memory for tpu_custom_call.1']
    #allocation5 [shape = 's32[1]{0}', space=sflag, size = 0x4, scoped, tag = 'scoped memory for tpu_custom_call.1']
    #allocation6 [shape = 'u8[65536]{0}', space=vmem, size = 0x10000, scoped, tag = 'input window, operand 1, single buffered']
    #allocation7 [shape = 's32[1]{0}', space=sflag, size = 0x4, scoped, tag = 'scoped memory for tpu_custom_call.1']
    #allocation8 [shape = 'u8[8192]{0}', space=vmem, size = 0x2000, scoped, tag = 'input window, operand 2, single buffered']
    #allocation9 [shape = 'u8[16384]{0}', space=vmem, size = 0x4000, scoped, tag = 'input window, operand 6, single buffered']
    #allocation10 [shape = 's32[1]{0}', space=sflag, size = 0x4, scoped, tag = 'scoped memory for tpu_custom_call.1']
    #allocation11 [shape = 'u8[16384]{0}', space=vmem, size = 0x4000, scoped, tag = 'input window, operand 10, single buffered']
    #allocation12 [shape = 'u8[512]{0}', space=smem, size = 0x200, scoped, tag = 'output window, operand 0, single buffered']
    %16 = vsyncpa [#allocation4], 0
    %17 = vsyncpa [#allocation7], 0
    %18 = vsyncpa [#allocation10], 0
    %19 = vsyncpa [#allocation5], 0
    // Predicated region
    $region2: #{tpu_custom_call.1} parent=1 // pred_check
      _
    $region3: #{tpu_custom_call.1} parent=1 // pred_check_branch
      %21 = sbr.rel (0) target = $region5
    $region4: #{tpu_custom_call.1} parent=1 // pred_region
      %23 = vsyncadd [#allocation4], 0
      %s24 = sshll.u32 %s0, 4
      %s25 = int_to_ptr.hbm [resolvable:$true] %s24
      %s26 = sshll.u32 [#allocation3], 4
      %s27 = int_to_ptr.vmem [resolvable:$true] %s26
      %32 = dma.hbm_to_vmem [thread:$0]  %s25, 2048, %s27, [#allocation4], 128, 128, 8
    $region5: #{tpu_custom_call.1} parent=1 // pred_fallthru
      _
    // Predicated region
    $region6: #{tpu_custom_call.1} parent=1 // pred_check
      _
    $region7: #{tpu_custom_call.1} parent=1 // pred_check_branch
      %34 = sbr.rel (0) target = $region9
    $region8: #{tpu_custom_call.1} parent=1 // pred_region
      %36 = vsyncadd [#allocation7], 0
      %s37 = sshll.u32 %s1, 4
      %s38 = int_to_ptr.hbm [resolvable:$true] %s37
      %s39 = sshll.u32 [#allocation6], 4
      %s40 = int_to_ptr.vmem [resolvable:$true] %s39
      %45 = dma.hbm_to_vmem [thread:$0]  %s38, 2048, %s40, [#allocation7], 128, 128, 8
    $region9: #{tpu_custom_call.1} parent=1 // pred_fallthru
      _
    // Predicated region
    $region10: #{tpu_custom_call.1} parent=1 // pred_check
      _
    $region11: #{tpu_custom_call.1} parent=1 // pred_check_branch
      %47 = sbr.rel (0) target = $region13
    $region12: #{tpu_custom_call.1} parent=1 // pred_region
      %49 = vsyncadd [#allocation7], 0
      %s50 = sshll.u32 %s2, 4
      %s51 = int_to_ptr.hbm [resolvable:$true] %s50
      %s52 = sshll.u32 [#allocation8], 4
      %s53 = int_to_ptr.vmem [resolvable:$true] %s52
      %58 = dma.hbm_to_vmem [thread:$0]  %s51, 256, %s53, [#allocation7], 128, 128, 8
    $region13: #{tpu_custom_call.1} parent=1 // pred_fallthru
      _
    // Predicated region
    $region14: #{tpu_custom_call.1} parent=1 // pred_check
      _
    $region15: #{tpu_custom_call.1} parent=1 // pred_check_branch
      %60 = sbr.rel (0) target = $region17
    $region16: #{tpu_custom_call.1} parent=1 // pred_region
      _
    $region17: #{tpu_custom_call.1} parent=1 // pred_fallthru
      _
    // Predicated region
    $region18: #{tpu_custom_call.1} parent=1 // pred_check
      _
    $region19: #{tpu_custom_call.1} parent=1 // pred_check_branch
      %62 = sbr.rel (0) target = $region21
    $region20: #{tpu_custom_call.1} parent=1 // pred_region
      _
    $region21: #{tpu_custom_call.1} parent=1 // pred_fallthru
      _
    // Predicated region
    $region22: #{tpu_custom_call.1} parent=1 // pred_check
      _
    $region23: #{tpu_custom_call.1} parent=1 // pred_check_branch
      %64 = sbr.rel (0) target = $region25
    $region24: #{tpu_custom_call.1} parent=1 // pred_region
      _
    $region25: #{tpu_custom_call.1} parent=1 // pred_fallthru
      _
    // Predicated region
    $region26: #{tpu_custom_call.1} parent=1 // pred_check
      _
    $region27: #{tpu_custom_call.1} parent=1 // pred_check_branch
      %66 = sbr.rel (0) target = $region29
    $region28: #{tpu_custom_call.1} parent=1 // pred_region
      %68 = vsyncadd [#allocation10], 0
      %s69 = sshll.u32 %s6, 4
      %s70 = int_to_ptr.hbm [resolvable:$true] %s69
      %s71 = sshll.u32 [#allocation9], 4
      %s72 = int_to_ptr.vmem [resolvable:$true] %s71
      %77 = dma.hbm_to_vmem [thread:$0]  %s70, 512, %s72, [#allocation10], 128, 128, 8
    $region29: #{tpu_custom_call.1} parent=1 // pred_fallthru
      _
    // Predicated region
    $region30: #{tpu_custom_call.1} parent=1 // pred_check
      _
    $region31: #{tpu_custom_call.1} parent=1 // pred_check_branch
      %79 = sbr.rel (0) target = $region33
    $region32: #{tpu_custom_call.1} parent=1 // pred_region
      _
    $region33: #{tpu_custom_call.1} parent=1 // pred_fallthru
      _
    // Predicated region
    $region34: #{tpu_custom_call.1} parent=1 // pred_check
      _
    $region35: #{tpu_custom_call.1} parent=1 // pred_check_branch
      %81 = sbr.rel (0) target = $region37
    $region36: #{tpu_custom_call.1} parent=1 // pred_region
      _
    $region37: #{tpu_custom_call.1} parent=1 // pred_fallthru
      _
    // Predicated region
    $region38: #{tpu_custom_call.1} parent=1 // pred_check
      _
    $region39: #{tpu_custom_call.1} parent=1 // pred_check_branch
      %83 = sbr.rel (0) target = $region41
    $region40: #{tpu_custom_call.1} parent=1 // pred_region
      _
    $region41: #{tpu_custom_call.1} parent=1 // pred_fallthru
      _
    // Predicated region
    $region42: #{tpu_custom_call.1} parent=1 // pred_check
      _
    $region43: #{tpu_custom_call.1} parent=1 // pred_check_branch
      %85 = sbr.rel (0) target = $region45
    $region44: #{tpu_custom_call.1} parent=1 // pred_region
      %87 = vsyncadd [#allocation10], 0
      %s88 = sshll.u32 %s10, 4
      %s89 = int_to_ptr.hbm [resolvable:$true] %s88
      %s90 = sshll.u32 [#allocation11], 4
      %s91 = int_to_ptr.vmem [resolvable:$true] %s90
      %96 = dma.hbm_to_vmem [thread:$0]  %s89, 512, %s91, [#allocation10], 128, 128, 8
    $region45: #{tpu_custom_call.1} parent=1 // pred_fallthru
      _
    // Predicated region
    $region46: #{tpu_custom_call.1} parent=1 // pred_check
      _
    $region47: #{tpu_custom_call.1} parent=1 // pred_check_branch
      %98 = sbr.rel (0) target = $region49
    $region48: #{tpu_custom_call.1} parent=1 // pred_region
      %100 = dma.done [#allocation4], 2048
    $region49: #{tpu_custom_call.1} parent=1 // pred_fallthru
      _
    // Predicated region
    $region50: #{tpu_custom_call.1} parent=1 // pred_check
      _
    $region51: #{tpu_custom_call.1} parent=1 // pred_check_branch
      %102 = sbr.rel (0) target = $region53
    $region52: #{tpu_custom_call.1} parent=1 // pred_region
      %104 = dma.done [#allocation7], 2048
    $region53: #{tpu_custom_call.1} parent=1 // pred_fallthru
      _
    // Predicated region
    $region54: #{tpu_custom_call.1} parent=1 // pred_check
      _
    $region55: #{tpu_custom_call.1} parent=1 // pred_check_branch
      %106 = sbr.rel (0) target = $region57
    $region56: #{tpu_custom_call.1} parent=1 // pred_region
      %108 = dma.done [#allocation7], 256
    $region57: #{tpu_custom_call.1} parent=1 // pred_fallthru
      _
    // Predicated region
    $region58: #{tpu_custom_call.1} parent=1 // pred_check
      _
    $region59: #{tpu_custom_call.1} parent=1 // pred_check_branch
      %110 = sbr.rel (0) target = $region61
    $region60: #{tpu_custom_call.1} parent=1 // pred_region
      %112 = dma.done [#allocation10], 512
    $region61: #{tpu_custom_call.1} parent=1 // pred_fallthru
      _
    // Predicated region
    $region62: #{tpu_custom_call.1} parent=1 // pred_check
      _
    $region63: #{tpu_custom_call.1} parent=1 // pred_check_branch
      %114 = sbr.rel (0) target = $region65
    $region64: #{tpu_custom_call.1} parent=1 // pred_region
      %116 = dma.done [#allocation10], 512
    $region65: #{tpu_custom_call.1} parent=1 // pred_fallthru
      _
    %p117 = scmp.eq.s32.totalorder 0, 0
    // Predicated region
    $region66: #{tpu_custom_call.1} parent=1 // pred_check
      %p118 = pneg %p117
    $region67: #{tpu_custom_call.1} parent=1 // pred_check_branch
      %120 = sbr.rel (%p118) target = $region69
    $region68: #{tpu_custom_call.1} parent=1 // pred_region
      %vm121 = vcmask 130048
      %122 = vst.msk [vmem:[#allocation2] sm:$0xff] %vm121, 0.0
      %123 = vst.msk [vmem:[#allocation2 + $0x8] sm:$0xff] %vm121, 0.0
    $region69: #{tpu_custom_call.1} parent=1 // pred_fallthru
      _
    %v124 = vld [vmem:[#allocation2] sm:$0xff]
    %v125 = vld [vmem:[#allocation3] sm:$0xff]
    %v126 = vld [vmem:[#allocation3 + $0x8] sm:$0xff]
    %v127 = vld [vmem:[#allocation3 + $0x10] sm:$0xff]
    %v128 = vld [vmem:[#allocation3 + $0x18] sm:$0xff]
    %v129 = vld [vmem:[#allocation3 + $0x20] sm:$0xff]
    %v130 = vld [vmem:[#allocation3 + $0x28] sm:$0xff]
    %v131 = vld [vmem:[#allocation3 + $0x30] sm:$0xff]
    %v132 = vld [vmem:[#allocation3 + $0x38] sm:$0xff]
    %v133 = vld [vmem:[#allocation3 + $0x40] sm:$0xff]
    %v134 = vld [vmem:[#allocation3 + $0x48] sm:$0xff]
    %v135 = vld [vmem:[#allocation3 + $0x50] sm:$0xff]
    %v136 = vld [vmem:[#allocation3 + $0x58] sm:$0xff]
    %v137 = vld [vmem:[#allocation3 + $0x60] sm:$0xff]
    %v138 = vld [vmem:[#allocation3 + $0x68] sm:$0xff]
    %v139 = vld [vmem:[#allocation3 + $0x70] sm:$0xff]
    %v140 = vld [vmem:[#allocation3 + $0x78] sm:$0xff]
    %vm141 = vcmask 523264
    %v142 = vsel %vm141, %v125, 0.0
    %143 = vadd.xlane.f32.xlu0 %v142
    %v144 = vpop.xlane.xlu0 %143
    %v145 = vsel %vm141, %v126, 0.0
    %146 = vadd.xlane.f32.xlu0 %v145
    %v147 = vpop.xlane.xlu0 %146
    %v148 = vsel %vm141, %v127, 0.0
    %149 = vadd.xlane.f32.xlu0 %v148
    %v150 = vpop.xlane.xlu0 %149
    %v151 = vsel %vm141, %v128, 0.0
    %152 = vadd.xlane.f32.xlu0 %v151
    %v153 = vpop.xlane.xlu0 %152
    %v154 = vsel %vm141, %v129, 0.0
    %155 = vadd.xlane.f32.xlu0 %v154
    %v156 = vpop.xlane.xlu0 %155
    %v157 = vsel %vm141, %v130, 0.0
    %158 = vadd.xlane.f32.xlu0 %v157
    %v159 = vpop.xlane.xlu0 %158
    %v160 = vsel %vm141, %v131, 0.0
    %161 = vadd.xlane.f32.xlu0 %v160
    %v162 = vpop.xlane.xlu0 %161
    %v163 = vsel %vm141, %v132, 0.0
    %164 = vadd.xlane.f32.xlu0 %v163
    %v165 = vpop.xlane.xlu0 %164
    %v166 = vsel %vm141, %v133, 0.0
    %167 = vadd.xlane.f32.xlu0 %v166
    %v168 = vpop.xlane.xlu0 %167
    %v169 = vsel %vm141, %v134, 0.0
    %170 = vadd.xlane.f32.xlu0 %v169
    %v171 = vpop.xlane.xlu0 %170
    %v172 = vsel %vm141, %v135, 0.0
    %173 = vadd.xlane.f32.xlu0 %v172
    %v174 = vpop.xlane.xlu0 %173
    %v175 = vsel %vm141, %v136, 0.0
    %176 = vadd.xlane.f32.xlu0 %v175
    %v177 = vpop.xlane.xlu0 %176
    %v178 = vsel %vm141, %v137, 0.0
    %179 = vadd.xlane.f32.xlu0 %v178
    %v180 = vpop.xlane.xlu0 %179
    %v181 = vsel %vm141, %v138, 0.0
    %182 = vadd.xlane.f32.xlu0 %v181
    %v183 = vpop.xlane.xlu0 %182
    %v184 = vsel %vm141, %v139, 0.0
    %185 = vadd.xlane.f32.xlu0 %v184
    %v186 = vpop.xlane.xlu0 %185
    %v187 = vsel %vm141, %v140, 0.0
    %188 = vadd.xlane.f32.xlu0 %v187
    %v189 = vpop.xlane.xlu0 %188
    %v206 = vlaneseq
    %v207 = vand.u32 %v206, 127
    %v208 = vperm.slane %v144, %v207
    %v209 = vadd.s32 %v207, 4294967288
    %v210 = vperm.slane %v147, %v209
    %vm211 = vcmask 130112
    %v212 = vsel %vm211, %v210, %v208
    %v213 = vperm.slane %v150, %v207
    %v214 = vperm.slane %v153, %v209
    %v215 = vsel %vm211, %v214, %v213
    %v216 = vperm.slane %v156, %v207
    %v217 = vperm.slane %v159, %v209
    %v218 = vsel %vm211, %v217, %v216
    %v219 = vperm.slane %v162, %v207
    %v220 = vperm.slane %v165, %v209
    %v221 = vsel %vm211, %v220, %v219
    %v222 = vperm.slane %v168, %v207
    %v223 = vperm.slane %v171, %v209
    %v224 = vsel %vm211, %v223, %v222
    %v225 = vperm.slane %v174, %v207
    %v226 = vperm.slane %v177, %v209
    %v227 = vsel %vm211, %v226, %v225
    %v228 = vperm.slane %v180, %v207
    %v229 = vperm.slane %v183, %v209
    %v230 = vsel %vm211, %v229, %v228
    %v231 = vperm.slane %v186, %v207
    %v232 = vperm.slane %v189, %v209
    %v233 = vsel %vm211, %v232, %v231
    %vm234 = vcmask 1041409
    %v235 = vsel %vm234, %v215, %v212
    %vm236 = vcmask 1042434
    %v237 = vsel %vm236, %v218, %v235
    %vm238 = vcmask 1043459
    %v239 = vsel %vm238, %v221, %v237
    %vm240 = vcmask 1044484
    %v241 = vsel %vm240, %v224, %v239
    %vm242 = vcmask 1045509
    %v243 = vsel %vm242, %v227, %v241
    %vm244 = vcmask 1046534
    %v245 = vsel %vm244, %v230, %v243
    %vm246 = vcmask 1047559
    %v247 = vsel %vm246, %v233, %v245
    %v249 = vadd.f32 %v124, %v247
    %vm250 = vcmask 130048
    %251 = vst.msk [vmem:[#allocation2] sm:$0xff] %vm250, %v249
    %s252 = scalar_lea.vmem [#allocation2], 8
    %v253 = vld [vmem:[%s252] sm:$0xff]
    %v254 = vld [vmem:[#allocation6] sm:$0xff]
    %v255 = vld [vmem:[#allocation6 + $0x8] sm:$0xff]
    %v256 = vld [vmem:[#allocation6 + $0x10] sm:$0xff]
    %v257 = vld [vmem:[#allocation6 + $0x18] sm:$0xff]
    %v258 = vld [vmem:[#allocation6 + $0x20] sm:$0xff]
    %v259 = vld [vmem:[#allocation6 + $0x28] sm:$0xff]
    %v260 = vld [vmem:[#allocation6 + $0x30] sm:$0xff]
    %v261 = vld [vmem:[#allocation6 + $0x38] sm:$0xff]
    %v262 = vld [vmem:[#allocation6 + $0x40] sm:$0xff]
    %v263 = vld [vmem:[#allocation6 + $0x48] sm:$0xff]
    %v264 = vld [vmem:[#allocation6 + $0x50] sm:$0xff]
    %v265 = vld [vmem:[#allocation6 + $0x58] sm:$0xff]
    %v266 = vld [vmem:[#allocation6 + $0x60] sm:$0xff]
    %v267 = vld [vmem:[#allocation6 + $0x68] sm:$0xff]
    %v268 = vld [vmem:[#allocation6 + $0x70] sm:$0xff]
    %v269 = vld [vmem:[#allocation6 + $0x78] sm:$0xff]
    %v270 = vsel %vm141, %v254, 0.0
    %271 = vadd.xlane.f32.xlu0 %v270
    %v272 = vpop.xlane.xlu0 %271
    %v273 = vsel %vm141, %v255, 0.0
    %274 = vadd.xlane.f32.xlu0 %v273
    %v275 = vpop.xlane.xlu0 %274
    %v276 = vsel %vm141, %v256, 0.0
    %277 = vadd.xlane.f32.xlu0 %v276
    %v278 = vpop.xlane.xlu0 %277
    %v279 = vsel %vm141, %v257, 0.0
    %280 = vadd.xlane.f32.xlu0 %v279
    %v281 = vpop.xlane.xlu0 %280
    %v282 = vsel %vm141, %v258, 0.0
    %283 = vadd.xlane.f32.xlu0 %v282
    %v284 = vpop.xlane.xlu0 %283
    %v285 = vsel %vm141, %v259, 0.0
    %286 = vadd.xlane.f32.xlu0 %v285
    %v287 = vpop.xlane.xlu0 %286
    %v288 = vsel %vm141, %v260, 0.0
    %289 = vadd.xlane.f32.xlu0 %v288
    %v290 = vpop.xlane.xlu0 %289
    %v291 = vsel %vm141, %v261, 0.0
    %292 = vadd.xlane.f32.xlu0 %v291
    %v293 = vpop.xlane.xlu0 %292
    %v294 = vsel %vm141, %v262, 0.0
    %295 = vadd.xlane.f32.xlu0 %v294
    %v296 = vpop.xlane.xlu0 %295
    %v297 = vsel %vm141, %v263, 0.0
    %298 = vadd.xlane.f32.xlu0 %v297
    %v299 = vpop.xlane.xlu0 %298
    %v300 = vsel %vm141, %v264, 0.0
    %301 = vadd.xlane.f32.xlu0 %v300
    %v302 = vpop.xlane.xlu0 %301
    %v303 = vsel %vm141, %v265, 0.0
    %304 = vadd.xlane.f32.xlu0 %v303
    %v305 = vpop.xlane.xlu0 %304
    %v306 = vsel %vm141, %v266, 0.0
    %307 = vadd.xlane.f32.xlu0 %v306
    %v308 = vpop.xlane.xlu0 %307
    %v309 = vsel %vm141, %v267, 0.0
    %310 = vadd.xlane.f32.xlu0 %v309
    %v311 = vpop.xlane.xlu0 %310
    %v312 = vsel %vm141, %v268, 0.0
    %313 = vadd.xlane.f32.xlu0 %v312
    %v314 = vpop.xlane.xlu0 %313
    %v315 = vsel %vm141, %v269, 0.0
    %316 = vadd.xlane.f32.xlu0 %v315
    %v317 = vpop.xlane.xlu0 %316
    %v334 = vperm.slane %v272, %v207
    %v335 = vperm.slane %v275, %v209
    %v336 = vsel %vm211, %v335, %v334
    %v337 = vperm.slane %v278, %v207
    %v338 = vperm.slane %v281, %v209
    %v339 = vsel %vm211, %v338, %v337
    %v340 = vperm.slane %v284, %v207
    %v341 = vperm.slane %v287, %v209
    %v342 = vsel %vm211, %v341, %v340
    %v343 = vperm.slane %v290, %v207
    %v344 = vperm.slane %v293, %v209
    %v345 = vsel %vm211, %v344, %v343
    %v346 = vperm.slane %v296, %v207
    %v347 = vperm.slane %v299, %v209
    %v348 = vsel %vm211, %v347, %v346
    %v349 = vperm.slane %v302, %v207
    %v350 = vperm.slane %v305, %v209
    %v351 = vsel %vm211, %v350, %v349
    %v352 = vperm.slane %v308, %v207
    %v353 = vperm.slane %v311, %v209
    %v354 = vsel %vm211, %v353, %v352
    %v355 = vperm.slane %v314, %v207
    %v356 = vperm.slane %v317, %v209
    %v357 = vsel %vm211, %v356, %v355
    %v358 = vsel %vm234, %v339, %v336
    %v359 = vsel %vm236, %v342, %v358
    %v360 = vsel %vm238, %v345, %v359
    %v361 = vsel %vm240, %v348, %v360
    %v362 = vsel %vm242, %v351, %v361
    %v363 = vsel %vm244, %v354, %v362
    %v364 = vsel %vm246, %v357, %v363
    %v366 = vadd.f32 %v253, %v364
    %367 = vst.msk [vmem:[%s252] sm:$0xff] %vm250, %v366
    // Predicated region
    $region70: #{tpu_custom_call.1} parent=1 // pred_check
      %p368 = pneg %p117
    $region71: #{tpu_custom_call.1} parent=1 // pred_check_branch
      %370 = sbr.rel (%p368) target = $region73
    $region72: #{tpu_custom_call.1} parent=1 // pred_region
      %v371 = vld [vmem:[#allocation2] sm:$0xff]
      %v372 = vld [vmem:[#allocation2 + $0x8] sm:$0xff]
      %v373 = vmul.f32 %v371, 0.015625
      %v374 = vmul.f32 %v372, 0.015625
      %v375 = vld [vmem:[#allocation8] sm:$0xff]
      %v376 = vld [vmem:[#allocation8 + $0x8] sm:$0xff]
      %v377 = vld [vmem:[%s3] sm:$0x1]
      %v378 = vld [vmem:[%s4] sm:$0x1]
      %v379 = vld [vmem:[%s5] sm:$0x1]
      %v380 = vld [vmem:[#allocation9] sm:$0xff]
      %v381 = vld [vmem:[#allocation9 + $0x8] sm:$0xff]
      %v382 = vld [vmem:[#allocation9 + $0x10] sm:$0xff]
      %v383 = vld [vmem:[#allocation9 + $0x18] sm:$0xff]
      %v384 = vld [vmem:[%s7] sm:$0x1]
      %v385 = vld [vmem:[%s8] sm:$0x1]
      %v386 = vld [vmem:[%s9] sm:$0x1]
      %v387 = vld [vmem:[#allocation11] sm:$0xff]
      %v388 = vld [vmem:[#allocation11 + $0x8] sm:$0xff]
      %v389 = vld [vmem:[#allocation11 + $0x10] sm:$0xff]
      %v390 = vld [vmem:[#allocation11 + $0x18] sm:$0xff]
      %v392 = vperm.slane %v377, 0
      %v395 = vsel %vm250, %v373, 0
      %v398 = vsel %vm250, %v374, 0
      %400 = vmatpush.msra.mxu0 0.0
      %401 = vmatpush.msra.mxu0 0.0
      %402 = vmatpush.msra.mxu0 0.0
      %403 = vmatpush.msra.mxu0 0.0
      %404 = vmatpush.msra.mxu0 0.0
      %405 = vmatpush.msra.mxu0 0.0
      %406 = vmatpush.msra.mxu0 0.0
      %407 = vmatpush.msra.mxu0 0.0
      %408 = vmatpush.msra.mxu0 0.0
      %409 = vmatpush.msra.mxu0 0.0
      %410 = vmatpush.msra.mxu0 0.0
      %411 = vmatpush.msra.mxu0 0.0
      %412 = vmatpush.msra.mxu0 0.0
      %413 = vmatpush.msra.mxu0 0.0
      %414 = vmatpush.msra.mxu0 %v376
      %415 = vmatpush.msra.mxu0 %v375
      %416 = vmatmul.f32.gmra.mxu0 %v395
      %v417 = vpop.f32.mrf.mxu0
      %v418 = vadd.f32 %v392, %v417
      %419 = vmatmul.f32.gmra.mxu0 %v398
      %v420 = vpop.f32.mrf.mxu0
      %v421 = vadd.f32 %v392, %v420
      %422 = vdwg.mxu0
      %vm423 = vcmask 261120
      %v424 = vsel %vm423, %v418, 0.0
      %v425 = vrot.slane %v424, 4
      %v426 = vadd.f32 %v424, %v425
      %v427 = vrot.slane %v426, 2
      %v428 = vadd.f32 %v426, %v427
      %v429 = vrot.slane %v428, 1
      %v430 = vadd.f32 %v428, %v429
      %v431 = vsel %vm423, %v421, 0.0
      %v432 = vrot.slane %v431, 4
      %v433 = vadd.f32 %v431, %v432
      %v434 = vrot.slane %v433, 2
      %v435 = vadd.f32 %v433, %v434
      %v436 = vrot.slane %v435, 1
      %v437 = vadd.f32 %v435, %v436
      %v438 = vmul.f32 %v430, 0.125
      %v439 = vmul.f32 %v437, 0.125
      %v440 = vsub.f32 %v418, %v438
      %v441 = vsub.f32 %v421, %v439
      %v442 = vmul.f32 %v440, %v440
      %v443 = vmul.f32 %v441, %v441
      %v444 = vsel %vm423, %v442, 0.0
      %v445 = vrot.slane %v444, 4
      %v446 = vadd.f32 %v444, %v445
      %v447 = vrot.slane %v446, 2
      %v448 = vadd.f32 %v446, %v447
      %v449 = vrot.slane %v448, 1
      %v450 = vadd.f32 %v448, %v449
      %v451 = vsel %vm423, %v443, 0.0
      %v452 = vrot.slane %v451, 4
      %v453 = vadd.f32 %v451, %v452
      %v454 = vrot.slane %v453, 2
      %v455 = vadd.f32 %v453, %v454
      %v456 = vrot.slane %v455, 1
      %v457 = vadd.f32 %v455, %v456
      %v458 = vmul.f32 %v450, 0.125
      %v459 = vmul.f32 %v457, 0.125
      %v460 = vadd.f32 %v458, 1e-05
      %v461 = vadd.f32 %v459, 1e-05
      %v462 = vrsqrt.pop %v460
      %v463 = vmul.f32 %v462, %v460
      %v464 = vmul.f32 %v463, %v462
      %v465 = vmul.f32 0.5, %v464
      %v466 = vsub.f32 1.5, %v465
      %v467 = vmul.f32 %v462, %v466
      %vm468 = vweird.f32 %v460
      %vm469 = vweird.f32 %v462
      %vm470 = vmor %vm468, %vm469
      %v471 = vsel %vm470, %v462, %v467
      %v472 = vrsqrt.pop %v461
      %v473 = vmul.f32 %v472, %v461
      %v474 = vmul.f32 %v473, %v472
      %v475 = vmul.f32 0.5, %v474
      %v476 = vsub.f32 1.5, %v475
      %v477 = vmul.f32 %v472, %v476
      %vm478 = vweird.f32 %v461
      %vm479 = vweird.f32 %v472
      %vm480 = vmor %vm478, %vm479
      %v481 = vsel %vm480, %v472, %v477
      %v482 = vmul.f32 %v440, %v471
      %v483 = vmul.f32 %v441, %v481
      %v485 = vperm.slane %v378, 0
      %v487 = vmul.f32 %v482, %v485
      %v488 = vmul.f32 %v483, %v485
      %v490 = vperm.slane %v379, 0
      %v492 = vadd.f32 %v487, %v490
      %v493 = vadd.f32 %v488, %v490
      %v494 = vmax.f32 %v492, 0.0
      %v495 = vmax.f32 %v493, 0.0
      %v497 = vperm.slane %v384, 0
      %v500 = vsel %vm423, %v494, 0
      %v503 = vsel %vm423, %v495, 0
      %505 = vmatpush.msra.mxu0 0.0
      %506 = vmatpush.msra.mxu0 0.0
      %507 = vmatpush.msra.mxu0 0.0
      %508 = vmatpush.msra.mxu0 0.0
      %509 = vmatpush.msra.mxu0 0.0
      %510 = vmatpush.msra.mxu0 0.0
      %511 = vmatpush.msra.mxu0 0.0
      %512 = vmatpush.msra.mxu0 0.0
      %513 = vmatpush.msra.mxu0 0.0
      %514 = vmatpush.msra.mxu0 0.0
      %515 = vmatpush.msra.mxu0 0.0
      %516 = vmatpush.msra.mxu0 0.0
      %517 = vmatpush.msra.mxu0 %v383
      %518 = vmatpush.msra.mxu0 %v382
      %519 = vmatpush.msra.mxu0 %v381
      %520 = vmatpush.msra.mxu0 %v380
      %521 = vmatmul.f32.gmra.mxu0 %v500
      %v522 = vpop.f32.mrf.mxu0
      %v523 = vadd.f32 %v497, %v522
      %524 = vmatmul.f32.gmra.mxu0 %v503
      %v525 = vpop.f32.mrf.mxu0
      %v526 = vadd.f32 %v497, %v525
      %527 = vdwg.mxu0
      %v528 = vsel %vm423, %v523, 0.0
      %v529 = vrot.slane %v528, 4
      %v530 = vadd.f32 %v528, %v529
      %v531 = vrot.slane %v530, 2
      %v532 = vadd.f32 %v530, %v531
      %v533 = vrot.slane %v532, 1
      %v534 = vadd.f32 %v532, %v533
      %v535 = vsel %vm423, %v526, 0.0
      %v536 = vrot.slane %v535, 4
      %v537 = vadd.f32 %v535, %v536
      %v538 = vrot.slane %v537, 2
      %v539 = vadd.f32 %v537, %v538
      %v540 = vrot.slane %v539, 1
      %v541 = vadd.f32 %v539, %v540
      %v542 = vmul.f32 %v534, 0.125
      %v543 = vmul.f32 %v541, 0.125
      %v544 = vsub.f32 %v523, %v542
      %v545 = vsub.f32 %v526, %v543
      %v546 = vmul.f32 %v544, %v544
      %v547 = vmul.f32 %v545, %v545
      %v548 = vsel %vm423, %v546, 0.0
      %v549 = vrot.slane %v548, 4
      %v550 = vadd.f32 %v548, %v549
      %v551 = vrot.slane %v550, 2
      %v552 = vadd.f32 %v550, %v551
      %v553 = vrot.slane %v552, 1
      %v554 = vadd.f32 %v552, %v553
      %v555 = vsel %vm423, %v547, 0.0
      %v556 = vrot.slane %v555, 4
      %v557 = vadd.f32 %v555, %v556
      %v558 = vrot.slane %v557, 2
      %v559 = vadd.f32 %v557, %v558
      %v560 = vrot.slane %v559, 1
      %v561 = vadd.f32 %v559, %v560
      %v562 = vmul.f32 %v554, 0.125
      %v563 = vmul.f32 %v561, 0.125
      %v564 = vadd.f32 %v562, 1e-05
      %v565 = vadd.f32 %v563, 1e-05
      %v566 = vrsqrt.pop %v564
      %v567 = vmul.f32 %v566, %v564
      %v568 = vmul.f32 %v567, %v566
      %v569 = vmul.f32 0.5, %v568
      %v570 = vsub.f32 1.5, %v569
      %v571 = vmul.f32 %v566, %v570
      %vm572 = vweird.f32 %v564
      %vm573 = vweird.f32 %v566
      %vm574 = vmor %vm572, %vm573
      %v575 = vsel %vm574, %v566, %v571
      %v576 = vrsqrt.pop %v565
      %v577 = vmul.f32 %v576, %v565
      %v578 = vmul.f32 %v577, %v576
      %v579 = vmul.f32 0.5, %v578
      %v580 = vsub.f32 1.5, %v579
      %v581 = vmul.f32 %v576, %v580
      %vm582 = vweird.f32 %v565
      %vm583 = vweird.f32 %v576
      %vm584 = vmor %vm582, %vm583
      %v585 = vsel %vm584, %v576, %v581
      %v586 = vmul.f32 %v544, %v575
      %v587 = vmul.f32 %v545, %v585
      %v589 = vperm.slane %v385, 0
      %v591 = vmul.f32 %v586, %v589
      %v592 = vmul.f32 %v587, %v589
      %v594 = vperm.slane %v386, 0
      %v596 = vadd.f32 %v591, %v594
      %v597 = vadd.f32 %v592, %v594
      %v598 = vmax.f32 %v596, 0.0
      %v599 = vmax.f32 %v597, 0.0
      %v601 = vsel %vm423, %v598, 0
      %v604 = vsel %vm423, %v599, 0
      %606 = vmatpush.msra.mxu0 0.0
      %607 = vmatpush.msra.mxu0 0.0
      %608 = vmatpush.msra.mxu0 0.0
      %609 = vmatpush.msra.mxu0 0.0
      %610 = vmatpush.msra.mxu0 0.0
      %611 = vmatpush.msra.mxu0 0.0
      %612 = vmatpush.msra.mxu0 0.0
      %613 = vmatpush.msra.mxu0 0.0
      %614 = vmatpush.msra.mxu0 0.0
      %615 = vmatpush.msra.mxu0 0.0
      %616 = vmatpush.msra.mxu0 0.0
      %617 = vmatpush.msra.mxu0 0.0
      %618 = vmatpush.msra.mxu0 %v390
      %619 = vmatpush.msra.mxu0 %v389
      %620 = vmatpush.msra.mxu0 %v388
      %621 = vmatpush.msra.mxu0 %v387
      %622 = vmatmul.f32.gmra.mxu0 %v601
      %v623 = vpop.f32.mrf.mxu0
      %v624 = vadd.f32 0.0, %v623
      %625 = vmatmul.f32.gmra.mxu0 %v604
      %v626 = vpop.f32.mrf.mxu0
      %v627 = vadd.f32 0.0, %v626
      %628 = vdwg.mxu0
      %v629 = vsub.f32 %v624, %v627
      %v630 = vmul.f32 %v629, %v629
      %v631 = vsel %vm423, %v630, 0.0
      %632 = vadd.xlane.f32.xlu0 %v631
      %v633 = vpop.xlane.xlu0 %632
      %v634 = vrot.slane %v633, 4
      %v635 = vadd.f32 %v633, %v634
      %v636 = vrot.slane %v635, 2
      %v637 = vadd.f32 %v635, %v636
      %v638 = vrot.slane %v637, 1
      %v639 = vadd.f32 %v637, %v638
      %s640 = vtos %v639
      %s641 = smul.f32 %s640, 0.00390625
      %v642 = vsel %vm423, %v624, 0.0
      %v643 = vrot.slane %v642, 4
      %v644 = vadd.f32 %v642, %v643
      %v645 = vrot.slane %v644, 2
      %v646 = vadd.f32 %v644, %v645
      %v647 = vrot.slane %v646, 1
      %v648 = vadd.f32 %v646, %v647
      %v649 = vmul.f32 %v648, 0.125
      %v650 = vsub.f32 %v624, %v649
      %v651 = vsel %vm423, %v627, 0.0
      %v652 = vrot.slane %v651, 4
      %v653 = vadd.f32 %v651, %v652
      %v654 = vrot.slane %v653, 2
      %v655 = vadd.f32 %v653, %v654
      %v656 = vrot.slane %v655, 1
      %v657 = vadd.f32 %v655, %v656
      %v658 = vmul.f32 %v657, 0.125
      %v659 = vsub.f32 %v627, %v658
      %v660 = vmul.f32 %v650, %v650
      %v661 = vsel %vm423, %v660, 0.0
      %v662 = vrot.slane %v661, 4
      %v663 = vadd.f32 %v661, %v662
      %v664 = vrot.slane %v663, 2
      %v665 = vadd.f32 %v663, %v664
      %v666 = vrot.slane %v665, 1
      %v667 = vadd.f32 %v665, %v666
      %v668 = vmul.f32 %v659, %v659
      %v669 = vsel %vm423, %v668, 0.0
      %v670 = vrot.slane %v669, 4
      %v671 = vadd.f32 %v669, %v670
      %v672 = vrot.slane %v671, 2
      %v673 = vadd.f32 %v671, %v672
      %v674 = vrot.slane %v673, 1
      %v675 = vadd.f32 %v673, %v674
      %v676 = vmul.f32 %v667, 0.14285715
      %v677 = vadd.f32 %v676, 0.0001
      %v678 = vrsqrt.pop %v677
      %v679 = vmul.f32 %v678, %v677
      %v680 = vmul.f32 %v679, %v678
      %v681 = vmul.f32 0.5, %v680
      %v682 = vsub.f32 1.5, %v681
      %v683 = vmul.f32 %v678, %v682
      %v684 = vmul.f32 %v677, %v683
      %vm685 = vcmp.eq.f32.partialorder %v677, inf
      %v686 = vsel %vm685, %v677, %v684
      %vm687 = vcmp.eq.f32.partialorder %v677, 0.0
      %v688 = vand.u32 %v677, 2147483648
      %v689 = vsel %vm687, %v688, %v686
      %v690 = vmul.f32 %v675, 0.14285715
      %v691 = vadd.f32 %v690, 0.0001
      %v692 = vrsqrt.pop %v691
      %v693 = vmul.f32 %v692, %v691
      %v694 = vmul.f32 %v693, %v692
      %v695 = vmul.f32 0.5, %v694
      %v696 = vsub.f32 1.5, %v695
      %v697 = vmul.f32 %v692, %v696
      %v698 = vmul.f32 %v691, %v697
      %vm699 = vcmp.eq.f32.partialorder %v691, inf
      %v700 = vsel %vm699, %v691, %v698
      %vm701 = vcmp.eq.f32.partialorder %v691, 0.0
      %v702 = vand.u32 %v691, 2147483648
      %v703 = vsel %vm701, %v702, %v700
      %v704 = vsub.f32 1.0, %v689
      %v705 = vmax.f32 %v704, 0.0
      %vm706 = vcmask 253952
      %v707 = vsel %vm706, %v705, 0.0
      %708 = vadd.xlane.f32.xlu0 %v707
      %v709 = vpop.xlane.xlu0 %708
      %v710 = vrot.slane %v709, 4
      %v711 = vadd.f32 %v709, %v710
      %v712 = vrot.slane %v711, 2
      %v713 = vadd.f32 %v711, %v712
      %v714 = vrot.slane %v713, 1
      %v715 = vadd.f32 %v713, %v714
      %s716 = vtos %v715
      %v717 = vrcp.pop 32.0
      %v718 = vmul.f32 32.0, %v717
      %v719 = vsub.f32 1.0, %v718
      %v720 = vmul.f32 %v717, %v719
      %v721 = vadd.f32 %v717, %v720
      %vm722 = vweird.f32 %v717
      %v723 = vsel %vm722, %v717, %v721
      %s724 = vtos %v723
      %s725 = smul.f32 %s716, %s724
      %v726 = vsub.f32 1.0, %v703
      %v727 = vmax.f32 %v726, 0.0
      %v728 = vsel %vm706, %v727, 0.0
      %729 = vadd.xlane.f32.xlu0 %v728
      %v730 = vpop.xlane.xlu0 %729
      %v731 = vrot.slane %v730, 4
      %v732 = vadd.f32 %v730, %v731
      %v733 = vrot.slane %v732, 2
      %v734 = vadd.f32 %v732, %v733
      %v735 = vrot.slane %v734, 1
      %v736 = vadd.f32 %v734, %v735
      %s737 = vtos %v736
      %v738 = vrcp.pop 32.0
      %v739 = vmul.f32 32.0, %v738
      %v740 = vsub.f32 1.0, %v739
      %v741 = vmul.f32 %v738, %v740
      %v742 = vadd.f32 %v738, %v741
      %vm743 = vweird.f32 %v738
      %v744 = vsel %vm743, %v738, %v742
      %s745 = vtos %v744
      %s746 = smul.f32 %s737, %s745
      %s747 = sadd.f32 %s725, %s746
      %v748 = vrcp.pop 2.0
      %v749 = vmul.f32 2.0, %v748
      %v750 = vsub.f32 1.0, %v749
      %v751 = vmul.f32 %v748, %v750
      %v752 = vadd.f32 %v748, %v751
      %vm753 = vweird.f32 %v748
      %v754 = vsel %vm753, %v748, %v752
      %s755 = vtos %v754
      %s756 = smul.f32 %s747, %s755
      %v758 = vsel %vm423, %v650, 0
      %760 = vmatpush.xpose.msra.mxu0 0.0
      %761 = vmatpush.xpose.msra.mxu0 0.0
      %762 = vmatpush.xpose.msra.mxu0 0.0
      %763 = vmatpush.xpose.msra.mxu0 0.0
      %764 = vmatpush.xpose.msra.mxu0 0.0
      %765 = vmatpush.xpose.msra.mxu0 0.0
      %766 = vmatpush.xpose.msra.mxu0 0.0
      %767 = vmatpush.xpose.msra.mxu0 0.0
      %768 = vmatpush.xpose.msra.mxu0 0.0
      %769 = vmatpush.xpose.msra.mxu0 0.0
      %770 = vmatpush.xpose.msra.mxu0 0.0
      %771 = vmatpush.xpose.msra.mxu0 0.0
      %772 = vmatpush.xpose.msra.mxu0 0.0
      %773 = vmatpush.xpose.msra.mxu0 0.0
      %774 = vmatpush.xpose.msra.mxu0 0.0
      %775 = vmatpush.xpose.msra.mxu0 %v758
      %776 = vmatmul.f32.gmra.mxu0 %v758
      %v777 = vpop.f32.mrf.mxu0
      %v778 = vadd.f32 0.0, %v777
      %779 = vdwg.mxu0
      %v781 = vsel %vm423, %v659, 0
      %783 = vmatpush.xpose.msra.mxu0 0.0
      %784 = vmatpush.xpose.msra.mxu0 0.0
      %785 = vmatpush.xpose.msra.mxu0 0.0
      %786 = vmatpush.xpose.msra.mxu0 0.0
      %787 = vmatpush.xpose.msra.mxu0 0.0
      %788 = vmatpush.xpose.msra.mxu0 0.0
      %789 = vmatpush.xpose.msra.mxu0 0.0
      %790 = vmatpush.xpose.msra.mxu0 0.0
      %791 = vmatpush.xpose.msra.mxu0 0.0
      %792 = vmatpush.xpose.msra.mxu0 0.0
      %793 = vmatpush.xpose.msra.mxu0 0.0
      %794 = vmatpush.xpose.msra.mxu0 0.0
      %795 = vmatpush.xpose.msra.mxu0 0.0
      %796 = vmatpush.xpose.msra.mxu0 0.0
      %797 = vmatpush.xpose.msra.mxu0 0.0
      %798 = vmatpush.xpose.msra.mxu0 %v781
      %799 = vmatmul.f32.gmra.mxu0 %v781
      %v800 = vpop.f32.mrf.mxu0
      %v801 = vadd.f32 0.0, %v800
      %802 = vdwg.mxu0
      %v803 = vmul.f32 %v778, %v778
      %vm804 = vcmask 64512
      %v805 = vsel %vm804, %v803, 0.0
      %806 = vadd.xlane.f32.xlu0 %v805
      %v807 = vpop.xlane.xlu0 %806
      %v808 = vrot.slane %v807, 4
      %v809 = vadd.f32 %v807, %v808
      %v810 = vrot.slane %v809, 2
      %v811 = vadd.f32 %v809, %v810
      %v812 = vrot.slane %v811, 1
      %v813 = vadd.f32 %v811, %v812
      %s814 = vtos %v813
      %v815 = vmul.f32 %v801, %v801
      %v816 = vsel %vm804, %v815, 0.0
      %817 = vadd.xlane.f32.xlu0 %v816
      %v818 = vpop.xlane.xlu0 %817
      %v819 = vrot.slane %v818, 4
      %v820 = vadd.f32 %v818, %v819
      %v821 = vrot.slane %v820, 2
      %v822 = vadd.f32 %v820, %v821
      %v823 = vrot.slane %v822, 1
      %v824 = vadd.f32 %v822, %v823
      %s825 = vtos %v824
      %v826 = vmul.f32 %v667, %v667
      %v827 = vsel %vm706, %v826, 0.0
      %828 = vadd.xlane.f32.xlu0 %v827
      %v829 = vpop.xlane.xlu0 %828
      %v830 = vrot.slane %v829, 4
      %v831 = vadd.f32 %v829, %v830
      %v832 = vrot.slane %v831, 2
      %v833 = vadd.f32 %v831, %v832
      %v834 = vrot.slane %v833, 1
      %v835 = vadd.f32 %v833, %v834
      %s836 = vtos %v835
      %v837 = vmul.f32 %v675, %v675
      %v838 = vsel %vm706, %v837, 0.0
      %839 = vadd.xlane.f32.xlu0 %v838
      %v840 = vpop.xlane.xlu0 %839
      %v841 = vrot.slane %v840, 4
      %v842 = vadd.f32 %v840, %v841
      %v843 = vrot.slane %v842, 2
      %v844 = vadd.f32 %v842, %v843
      %v845 = vrot.slane %v844, 1
      %v846 = vadd.f32 %v844, %v845
      %s847 = vtos %v846
      %s848 = ssub.f32 %s814, %s836
      %s849 = ssub.f32 %s825, %s847
      %s850 = sadd.f32 %s848, %s849
      %s851 = smul.f32 %s850, 0.020408163
      %v852 = vrcp.pop 32.0
      %v853 = vmul.f32 32.0, %v852
      %v854 = vsub.f32 1.0, %v853
      %v855 = vmul.f32 %v852, %v854
      %v856 = vadd.f32 %v852, %v855
      %vm857 = vweird.f32 %v852
      %v858 = vsel %vm857, %v852, %v856
      %s859 = vtos %v858
      %s860 = smul.f32 %s851, %s859
      %s861 = smul.f32 %s641, 25.0
      %s862 = smul.f32 %s756, 25.0
      %s863 = sadd.f32 %s861, %s862
      %s864 = sadd.f32 %s863, %s860
      %s865 = scalar_lea.smem [#allocation12], 0
      %866 = sst [smem:[%s865]] %s864
    $region73: #{tpu_custom_call.1} parent=1 // pred_fallthru
      _
    // Predicated region
    $region74: #{tpu_custom_call.1} parent=1 // pred_check
      _
    $region75: #{tpu_custom_call.1} parent=1 // pred_check_branch
      %868 = sbr.rel (0) target = $region77
    $region76: #{tpu_custom_call.1} parent=1 // pred_region
      %870 = vsyncadd [#allocation5], 0
      %s872 = sshll.u32 %s11, 4
      %s873 = int_to_ptr.hbm [resolvable:$true] %s872
      %875 = dma.smem_to_hbm [#allocation12], 16, %s873, [#allocation5]
    $region77: #{tpu_custom_call.1} parent=1 // pred_fallthru
      _
    // Predicated region
    $region78: #{tpu_custom_call.1} parent=1 // pred_check
      _
    $region79: #{tpu_custom_call.1} parent=1 // pred_check_branch
      %877 = sbr.rel (0) target = $region81
    $region80: #{tpu_custom_call.1} parent=1 // pred_region
      %879 = dma.done [#allocation5], 16
    $region81: #{tpu_custom_call.1} parent=1 // pred_fallthru
      _
    %880 = sfence
    %881 = vsyncpa [#allocation4], 1
    %882 = vsyncpa [#allocation7], 1
    %883 = vsyncpa [#allocation10], 1
    %884 = vsyncpa [#allocation5], 1

</llo_original>
